<compile_context>
chip_gen: v7x
topology: tpu7x:2x2x1
jax: 0.10.0
libtpu: 0.0.40
codegen_flags: <defaults>
</compile_context>

<pallas_src>
import functools

import jax
import jax.numpy as jnp
from jax.experimental import pallas as pl
from jax.experimental.pallas import tpu as pltpu

EPS = 1e-5          # nn.InstanceNorm2d default eps
NEG_SLOPE = 0.2     # LeakyReLU negative_slope


@functools.lru_cache(maxsize=None)
def _roll_sign():
    """pltpu.roll is documented to match jnp.roll; this one-time probe guards
    against a flipped rotate convention so the tap shifts stay correct."""
    def k(x_ref, o_ref):
        o_ref[...] = pltpu.roll(x_ref[...], 1, axis=1)
    x = jnp.broadcast_to(jax.lax.iota(jnp.float32, 128), (8, 128))
    y = pl.pallas_call(k, out_shape=jax.ShapeDtypeStruct((8, 128), jnp.float32))(x)
    return 1 if int(y[0, 0]) == 127 else -1


def _instance_norm_lrelu(v, hw):
    """One-pass InstanceNorm2d (affine=False, biased var) + LeakyReLU(0.2).

    v: (C, HW) f32; statistics are per row (= per image, per channel)."""
    inv_n = 1.0 / hw
    s = jnp.sum(v, axis=1, keepdims=True)
    ss = jnp.sum(v * v, axis=1, keepdims=True)
    mean = s * inv_n
    var = jnp.maximum(ss * inv_n - mean * mean, 0.0)
    y = (v - mean) * jax.lax.rsqrt(var + EPS)
    return jnp.where(y >= 0, y, NEG_SLOPE * y)


def _conv_block_kernel(x_ref, w1_ref, w2_ref, out_ref, s1_ref, s2_ref,
                       *, bb, h, w, cin, cout, roll_sign):
    """One grid step == the full ConvBlock for a block of `bb` images.

    x_ref:   (bb, Cin, HW)   f32   NCHW input, spatial flattened on lanes
    w1_ref:  (Cout, 9*Cin)   bf16  conv1 weight, K ordered (tap, ci)
    w2_ref:  (Cout, 9*Cout)  bf16  conv2 weight, K ordered (tap, ci)
    out_ref: (bb, Cout, HW)  f32   channel-major output (already NCHW-flat)
    s1_ref:  (9*Cin, HW)     f32   VMEM staging for conv1 shifted taps
    s2_ref:  (9*Cout, HW)    f32   VMEM staging for conv2 shifted taps
    """
    hw = h * w

    # Static tap geometry: lane-rotation amount + border-validity mask.
    pos = jax.lax.broadcasted_iota(jnp.int32, (1, hw), 1)
    col = (pos & (w - 1)) if (w & (w - 1)) == 0 else (pos % w)
    taps = []
    for k in range(9):
        dy, dx = k // 3 - 1, k % 3 - 1
        shift = (roll_sign * -(dy * w + dx)) % hw
        conds = []
        if dy == -1:
            conds.append(pos >= w)               # drop top image row
        elif dy == 1:
            conds.append(pos < (h - 1) * w)      # drop bottom image row
        if dx == -1:
            conds.append(col >= 1)               # drop left column
        elif dx == 1:
            conds.append(col < w - 1)            # drop right column
        mask = None
        for c in conds:
            mask = c if mask is None else jnp.logical_and(mask, c)
        taps.append((shift, mask))

    def stage_taps(feat, scr):
        """feat: (C, HW) f32 -> scr filled with (9*C, HW); returns bf16 view.

        Rolls are lane rotations (XLU); masks zero the circular wrap so the
        result matches zero-padded 'SAME' convolution windows.  Staging stays
        f32 (well-trodden 32-bit rotate/masked-store path); operands are cast
        to bf16 only for the MXU."""
        c = feat.shape[0]
        for k, (shift, mask) in enumerate(taps):
            t = feat if shift == 0 else pltpu.roll(feat, shift, axis=1)
            if mask is not None:
                t = jnp.where(mask, t, 0.0)
            scr[k * c:(k + 1) * c, :] = t
        return scr[...].astype(jnp.bfloat16)

    w1 = w1_ref[...]
    w2 = w2_ref[...]
    for b in range(bb):                     # static unroll over the image block
        # conv1 (single fused K=9*Cin MXU contraction) -> IN -> LeakyReLU.
        a1 = jnp.dot(w1, stage_taps(x_ref[b], s1_ref),
                     preferred_element_type=jnp.float32)       # (Cout, HW) f32
        h1 = _instance_norm_lrelu(a1, hw)
        # Dropout2d == identity (inference).
        # conv2 -> IN -> LeakyReLU; intermediate never leaves VMEM.
        a2 = jnp.dot(w2, stage_taps(h1, s2_ref),
                     preferred_element_type=jnp.float32)       # (Cout, HW) f32
        out_ref[b] = _instance_norm_lrelu(a2, hw).astype(out_ref.dtype)


def conv_block_forward(image_nchw, w1_hwio, w2_hwio, drop_prob=0.0):
    """ConvBlock.forward: (N, Cin, H, W) -> (N, Cout, H, W)."""
    del drop_prob   # Dropout2d is identity in inference mode (see TODO above).
    n, cin, h, w = image_nchw.shape
    cout = w1_hwio.shape[-1]
    hw = h * w

    # NCHW -> (N, Cin, HW): a free reshape, no transpose / extra HBM pass.
    x = image_nchw.reshape(n, cin, hw)

    # Weights: HWIO (3,3,Ci,Co) -> (Co, 9*Ci) with K ordered (tap=kh*3+kw, ci),
    # cast to bf16 for the MXU.  (PyTorch OIHW maps here via permute(2,3,1,0).)
    def pack_w(wt):
        ci, co = wt.shape[2], wt.shape[3]
        return (wt.reshape(9, ci, co).transpose(2, 0, 1)
                  .reshape(co, 9 * ci).astype(jnp.bfloat16))

    bb = n if n <= 8 else 1      # fold small batches into one grid step
    assert n % bb == 0, (n, bb)

    kernel = functools.partial(_conv_block_kernel, bb=bb, h=h, w=w,
                               cin=cin, cout=cout, roll_sign=_roll_sign())
    out = pl.pallas_call(
        kernel,
        out_shape=jax.ShapeDtypeStruct((n, cout, hw), jnp.float32),
        grid=(n // bb,),
        in_specs=[
            pl.BlockSpec((bb, cin, hw), lambda i: (i, 0, 0)),
            pl.BlockSpec((cout, 9 * cin), lambda i: (0, 0)),
            pl.BlockSpec((cout, 9 * cout), lambda i: (0, 0)),
        ],
        out_specs=pl.BlockSpec((bb, cout, hw), lambda i: (i, 0, 0)),
        scratch_shapes=[
            pltpu.VMEM((9 * cin, hw), jnp.float32),
            pltpu.VMEM((9 * cout, hw), jnp.float32),
        ],
        compiler_params=pltpu.CompilerParams(
            dimension_semantics=("parallel",),
            vmem_limit_bytes=64 * 1024 * 1024,
        ),
    )(x, pack_w(w1_hwio), pack_w(w2_hwio))

    return out.reshape(n, cout, h, w)        # already channel-major / NCHW


# ---------------------------------------------------------------- reference --
def _ref_layer(x_nhwc, w_hwio):
    # Round the matmul operands to bf16 exactly like the kernel does, then
    # convolve / normalize in f32 (matches the kernel's bf16-MXU + f32-acc).
    xq = x_nhwc.astype(jnp.bfloat16).astype(jnp.float32)
    wq = w_hwio.astype(jnp.bfloat16).astype(jnp.float32)
    y = jax.lax.conv_general_dilated(
        xq, wq, window_strides=(1, 1), padding="SAME",
        dimension_numbers=("NHWC", "HWIO", "NHWC"),
        precision=jax.lax.Precision.HIGHEST)
    mean = jnp.mean(y, axis=(1, 2), keepdims=True)
    var = jnp.mean((y - mean) ** 2, axis=(1, 2), keepdims=True)
    y = (y - mean) * jax.lax.rsqrt(var + EPS)
    return jnp.where(y >= 0, y, NEG_SLOPE * y)


def _ref_forward(image_nchw, w1_hwio, w2_hwio):
    x = jnp.transpose(image_nchw, (0, 2, 3, 1))
    y = _ref_layer(_ref_layer(x, w1_hwio), w2_hwio)
    return jnp.transpose(y, (0, 3, 1, 2))


if __name__ == "__main__":
    # ConvBlock(in_chans=4, out_chans=8, drop_prob=0.1)
    N, IN_CHANS, OUT_CHANS, H, W = 2, 4, 8, 16, 16

    key = jax.random.PRNGKey(0)
    kx, k1, k2 = jax.random.split(key, 3)
    x = jax.random.normal(kx, (N, IN_CHANS, H, W), jnp.float32)
    # Deterministic synthetic weights, HWIO layout (3, 3, Cin, Cout).
    w1 = 0.1 * jax.random.normal(k1, (3, 3, IN_CHANS, OUT_CHANS), jnp.float32)
    w2 = 0.1 * jax.random.normal(k2, (3, 3, OUT_CHANS, OUT_CHANS), jnp.float32)

    out = conv_block_forward(x, w1, w2, drop_prob=0.1)
    out = jax.block_until_ready(out)

    ref = _ref_forward(x, w1, w2)
    assert out.shape == (N, OUT_CHANS, H, W), out.shape
    # bf16 MXU operands (f32 accumulation): compare against a bf16-operand
    # reference with a tolerance that absorbs accumulation-order / rounding-
    # boundary differences.
    err = float(jnp.max(jnp.abs(out - ref)))
    assert jnp.allclose(out, ref, rtol=2e-2, atol=2e-2), f"max|err|={err}"

    print("KERNEL_OK")
</pallas_src>

<mosaic_0001>
module attributes {stable_mosaic.version = 11 : i64} {
  func.func @k(%arg0: memref<8x128xf32, #tpu.memory_space<vmem>>, %arg1: memref<8x128xf32, #tpu.memory_space<vmem>>) attributes {dimension_semantics = [], scalar_prefetch = 0 : i64, scratch_operands = 0 : i64, tpu.core_type = #tpu.core_type<tc>} {
    %c0 = arith.constant 0 : index
    %c0_0 = arith.constant 0 : index
    %0 = vector.load %arg0[%c0, %c0_0] : memref<8x128xf32, #tpu.memory_space<vmem>>, vector<8x128xf32>
    %c1_i32 = arith.constant 1 : i32
    %1 = tpu.dynamic_rotate %0 by %c1_i32 dim 1 : vector<8x128xf32>, i32 -> vector<8x128xf32>
    %c0_1 = arith.constant 0 : index
    %c0_2 = arith.constant 0 : index
    %2 = vector.load %arg1[%c0_1, %c0_2] : memref<8x128xf32, #tpu.memory_space<vmem>>, vector<8x128xf32>
    tpu.vector_store %arg1[%c0_1, %c0_2], %1 {strides = array<i32>} : memref<8x128xf32, #tpu.memory_space<vmem>>, vector<8x128xf32>,
    return
  }
}

</mosaic_0001>

<llo_original>
// kernel: tpu_custom_call.1
$region0: #{tpu_custom_call.1}
  #allocation0 [shape = 'u32[]', space=smem, size = 0x4, offset = 0x4, fixed_abs, tag = 'smem constant byte address 0x4 - core index']
  #allocation1 [shape = 'u32[144,128]{1,0:T(1,128)}', space=vmem, size = 0x12000, scoped, tag = 'internal scratch']
  %s0 = inlined_call_operand.hbm [shape: f32[8,128], index: 0, kind: input, shape index: {}]
  %s1 = inlined_call_operand.hbm [shape: f32[8,128], index: 1, kind: output, shape index: {}]
  %s2 = sld [smem:[#allocation0]]
  $region18: #{tpu_custom_call.1} parent=0
    _
  %s4 = ssub.s32 1, %s2
  %s5 = scalar_select 0, %s4, %s2
  $region1: #{tpu_custom_call.1} parent=0
    #allocation2 [shape = 'u8[4096]{0}', space=vmem, size = 0x1000, scoped, tag = 'input window, operand 0, single buffered']
    #allocation3 [shape = 's32[1]{0}', space=sflag, size = 0x4, scoped, tag = 'scoped memory for tpu_custom_call.1']
    #allocation4 [shape = 's32[1]{0}', space=sflag, size = 0x4, scoped, tag = 'scoped memory for tpu_custom_call.1']
    #allocation5 [shape = 'u8[4096]{0}', space=vmem, size = 0x1000, scoped, tag = 'output window, operand 0, single buffered']
    %6 = vsyncpa [#allocation3], 0
    %7 = vsyncpa [#allocation4], 0
    // Predicated region
    $region2: #{tpu_custom_call.1} parent=1 // pred_check
      _
    $region3: #{tpu_custom_call.1} parent=1 // pred_check_branch
      %9 = sbr.rel (0) target = $region5
    $region4: #{tpu_custom_call.1} parent=1 // pred_region
      %s11 = ssub.s32 128, 128
      %12 = vsyncadd [#allocation3], %s11
      %s14 = sshll.u32 [#allocation2], 4
      %s15 = int_to_ptr.vmem [resolvable:$true] %s14
      %17 = dma.hbm_to_vmem [thread:$0]  %s0, 128, %s15, [#allocation3]
    $region5: #{tpu_custom_call.1} parent=1 // pred_fallthru
      _
    // Predicated region
    $region6: #{tpu_custom_call.1} parent=1 // pred_check
      _
    $region7: #{tpu_custom_call.1} parent=1 // pred_check_branch
      %19 = sbr.rel (0) target = $region9
    $region8: #{tpu_custom_call.1} parent=1 // pred_region
      %20 = dma.done [#allocation3], 128
    $region9: #{tpu_custom_call.1} parent=1 // pred_fallthru
      _
    %v21 = vld [vmem:[#allocation2] sm:$0xff]
    %22 = vrot.lane.b32.xlu0 %v21, 1
    %v23 = vpop.permute.xlu0 %22
    %24 = vst [vmem:[#allocation5] sm:$0xff] %v23
    // Predicated region
    $region10: #{tpu_custom_call.1} parent=1 // pred_check
      _
    $region11: #{tpu_custom_call.1} parent=1 // pred_check_branch
      %26 = sbr.rel (0) target = $region13
    $region12: #{tpu_custom_call.1} parent=1 // pred_region
      %s28 = ssub.s32 128, 128
      %29 = vsyncadd [#allocation4], %s28
      %s31 = sshll.u32 [#allocation5], 4
      %s32 = int_to_ptr.vmem [resolvable:$true] %s31
      %34 = dma.vmem_to_hbm [thread:$0]  %s32, 128, %s1, [#allocation4]
    $region13: #{tpu_custom_call.1} parent=1 // pred_fallthru
      _
    // Predicated region
    $region14: #{tpu_custom_call.1} parent=1 // pred_check
      _
    $region15: #{tpu_custom_call.1} parent=1 // pred_check_branch
      %36 = sbr.rel (0) target = $region17
    $region16: #{tpu_custom_call.1} parent=1 // pred_region
      %37 = dma.done [#allocation4], 128
    $region17: #{tpu_custom_call.1} parent=1 // pred_fallthru
      _
    %38 = vsyncpa [#allocation3], 1
    %39 = vsyncpa [#allocation4], 1

</llo_original>
